<compile_context>
chip_gen: v7x
topology: tpu7x:2x2x1
jax: 0.10.0
libtpu: 0.0.40
codegen_flags: <defaults>
</compile_context>

<pallas_src>
import math
from functools import partial

import jax
import jax.numpy as jnp
from jax.experimental import pallas as pl
from jax.experimental.pallas import tpu as pltpu

F32 = jnp.float32
BF16 = jnp.bfloat16
NS, NV = 64, 8          # scalar / vector multiplicities of the equivariant block
LN_EPS = 1e-5

TE_SEG = 256            # edge-slot tile for the segment-scatter kernels
TN_SEG = 128            # node block (accumulator rows) for the segment scatter
TN_NODE = 128           # node-row tile for node-wise kernels
NODE_ALIGN = 128        # Npad alignment (multiple of TN_SEG / TN_NODE / linear TM)
VMEM_LIMIT = 32 * 1024 * 1024   # explicit scoped-VMEM cap, safe on v5e/v6e/v7x


def _rup(v, m):
    return (v + m - 1) // m * m


def _row(v):
    return v.reshape(1, -1).astype(F32)


def _bf(x):
    return x.astype(BF16)


def _full_spec(arr):
    nd = arr.ndim
    return pl.BlockSpec(arr.shape, lambda *_, nd=nd: (0,) * nd)


# ----------------------------------------------------------------- helpers
def _sigmoid(x):
    return 1.0 / (1.0 + jnp.exp(-x))


def _silu(x):
    return x * _sigmoid(x)


def _softplus(x):
    return jnp.maximum(x, 0.0) + jnp.log(1.0 + jnp.exp(-jnp.abs(x)))


def _layernorm(x, g, b):
    m = jnp.mean(x, axis=-1, keepdims=True)
    v = jnp.mean((x - m) ** 2, axis=-1, keepdims=True)
    return (x - m) * jax.lax.rsqrt(v + LN_EPS) * g + b


# ------------------------------------------- row/col tiled fused linear
def _linear_kernel(x_ref, w_ref, b_ref, o_ref, *, act):
    y = jnp.dot(x_ref[...].astype(BF16), w_ref[...].astype(BF16),
                preferred_element_type=jnp.float32)
    y = y + b_ref[...]
    if act == "relu":
        y = jnp.maximum(y, 0.0)
    elif act == "silu":
        y = _silu(y)
    o_ref[...] = y


def linear(x, w, b, act="none"):
    """y = x @ w + b (bf16 operands, f32 accum), tiled over rows & columns."""
    M, K = x.shape
    Kw, N = w.shape
    assert K == Kw
    x = x.astype(F32)
    w = w.astype(F32)
    if K < 8:  # pad tiny contraction dims (e.g. Linear(1, 8)) with zeros
        pad = 8 - K
        x = jnp.pad(x, ((0, 0), (0, pad)))
        w = jnp.pad(w, ((0, pad), (0, 0)))
        K = 8
    TN = 256 if N % 256 == 0 else (128 if N % 128 == 0 else N)
    Mp = _rup(M, 8)
    if Mp != M:
        x = jnp.pad(x, ((0, Mp - M), (0, 0)))
    TM = next(t for t in (512, 256, 128, 64, 32, 16, 8) if Mp % t == 0)
    b2 = b.reshape(1, N).astype(F32)
    out = pl.pallas_call(
        partial(_linear_kernel, act=act),
        out_shape=jax.ShapeDtypeStruct((Mp, N), F32),
        grid=(Mp // TM, N // TN),
        in_specs=[
            pl.BlockSpec((TM, K), lambda i, j: (i, 0)),
            pl.BlockSpec((K, TN), lambda i, j: (0, j)),
            pl.BlockSpec((1, TN), lambda i, j: (0, j)),
        ],
        out_specs=pl.BlockSpec((TM, TN), lambda i, j: (i, j)),
        compiler_params=pltpu.CompilerParams(
            dimension_semantics=("parallel", "parallel"),
            vmem_limit_bytes=VMEM_LIMIT),
    )(x, w, b2)
    return out[:M] if Mp != M else out


# ------------------------------------------------ RBF + Linear + Softplus
def _rbf_kernel(ef_ref, inv_ref, centers_ref, wr_ref, wi_ref, b_ref, o_ref,
                *, gamma):
    rbf = jnp.exp(-gamma * (ef_ref[...] - centers_ref[...]) ** 2)       # [TE,bins]
    y = (jnp.dot(rbf.astype(BF16), wr_ref[...], preferred_element_type=jnp.float32)
         + jnp.dot(inv_ref[...].astype(BF16), wi_ref[...],
                   preferred_element_type=jnp.float32)
         + b_ref[...])
    o_ref[...] = _softplus(y).astype(o_ref.dtype)


def rbf_edge_features(ef_all, inv_pad, centers, w_rbf, w_inv, bias, gamma, D):
    Epad = ef_all.shape[0]
    TE = 128
    return pl.pallas_call(
        partial(_rbf_kernel, gamma=gamma),
        out_shape=jax.ShapeDtypeStruct((Epad, D), BF16),
        grid=(Epad // TE,),
        in_specs=[
            pl.BlockSpec((TE, 1), lambda e: (e, 0)),
            pl.BlockSpec((TE, inv_pad.shape[1]), lambda e: (e, 0)),
            _full_spec(centers),
            _full_spec(w_rbf),
            _full_spec(w_inv),
            pl.BlockSpec((1, D), lambda e: (0, 0)),
        ],
        out_specs=pl.BlockSpec((TE, D), lambda e: (e, 0)),
        compiler_params=pltpu.CompilerParams(
            dimension_semantics=("parallel",), vmem_limit_bytes=VMEM_LIMIT),
    )(ef_all, inv_pad, centers, _bf(w_rbf), _bf(w_inv), bias.reshape(1, D))


# ------------------------------------------------- segment-scatter layout
def build_scatter_layout(src, dst, Npad, TN, TE):
    """Bucket edges by destination node-block -> padded slot layout.

    Returns scalar-prefetch arrays (tile_block, first_flag), per-slot gather
    indices, in-kernel relative-dst (dst_rel, replicated 8x over sublanes) and
    an exact f32 inverse edge count per node (for mean aggregation).
    """
    E = dst.shape[0]
    num_blocks = Npad // TN
    blk = dst // TN                                                   # [E]
    counts = jnp.zeros((num_blocks,), jnp.int32).at[blk].add(1)
    tiles_per_block = jnp.maximum((counts + TE - 1) // TE, 1)         # >= 1
    tile_off = jnp.concatenate(
        [jnp.zeros((1,), jnp.int32), jnp.cumsum(tiles_per_block)])
    num_tiles = E // TE + num_blocks + 1                              # static bound
    S = num_tiles * TE

    order = jnp.argsort(blk).astype(jnp.int32)                        # group by block
    blk_s = blk[order]
    starts = jnp.concatenate(
        [jnp.zeros((1,), jnp.int32), jnp.cumsum(counts)])[:-1]
    rank = jnp.arange(E, dtype=jnp.int32) - starts[blk_s]
    slot = tile_off[blk_s] * TE + rank                                # slot per edge

    edge_slot = jnp.zeros((S,), jnp.int32).at[slot].set(order)
    valid = jnp.zeros((S,), jnp.bool_).at[slot].set(True)

    tile_ids = jnp.arange(num_tiles, dtype=jnp.int32)
    tile_block = jnp.searchsorted(tile_off[1:], tile_ids,
                                  side="right").astype(jnp.int32)
    tile_block = jnp.minimum(tile_block, num_blocks - 1)              # trailing dead tiles
    first_flag = jnp.concatenate(
        [jnp.ones((1,), jnp.int32),
         (tile_block[1:] != tile_block[:-1]).astype(jnp.int32)])

    dst_rel = jnp.where(valid, dst[edge_slot] % TN, -1).astype(jnp.int32)
    dst_rel = jnp.repeat(dst_rel.reshape(num_tiles, TE), 8, axis=0)   # sublane aligned

    cnt = jnp.zeros((Npad,), F32).at[dst].add(1.0)
    inv_cnt = (1.0 / jnp.maximum(cnt, 1.0)).reshape(Npad, 1)

    return dict(num_tiles=num_tiles, tile_block=tile_block, first_flag=first_flag,
                dst_rel=dst_rel, edge_slot=edge_slot,
                src_slot=src[edge_slot], dst_slot=dst[edge_slot],
                inv_cnt=inv_cnt)


# ------------------------------------- ComformerConv: fused message + scatter
def _conv_seg_kernel(tb_ref, fst_ref,
                     hd_ref, hs_ref, ef_ref, dr_ref,
                     wq_ref, bq_ref, wk_ref, bk_ref, wv_ref, bv_ref,
                     we_ref, be_ref,
                     ku1_ref, kb1_ref, ku2_ref, kb2_ref,
                     mu1_ref, mb1_ref, mu2_ref, mb2_ref,
                     lnA_g_ref, lnA_b_ref,
                     wmsg_ref, bmsg_ref, lnM_g_ref, lnM_b_ref,
                     o_ref, *, C, TN):
    t = pl.program_id(0)
    TE = hd_ref.shape[0]

    def dot(a, b):
        return jnp.dot(a.astype(BF16), b, preferred_element_type=jnp.float32)

    hd, hs, ef = hd_ref[...], hs_ref[...], ef_ref[...]
    # fused q/k/v/e projections on the gathered rows (bf16 MXU, f32 accum)
    q_i = dot(hd, wq_ref[...]) + bq_ref[...]
    k_i = dot(hd, wk_ref[...]) + bk_ref[...]
    k_j = dot(hs, wk_ref[...]) + bk_ref[...]
    v_i = dot(hd, wv_ref[...]) + bv_ref[...]
    v_j = dot(hs, wv_ref[...]) + bv_ref[...]
    e = dot(ef, we_ref[...]) + be_ref[...]
    # key MLP: concat(k_i,k_j,e) @ W1  ==  k_i@W1a + k_j@W1b + e@W1c
    ku1 = ku1_ref[...]
    h1 = (dot(k_i, ku1[0:C]) + dot(k_j, ku1[C:2 * C]) + dot(e, ku1[2 * C:])
          + kb1_ref[...])
    ke = dot(_silu(h1), ku2_ref[...]) + kb2_ref[...]
    alpha = q_i * ke * (1.0 / math.sqrt(C))
    gate = _sigmoid(_layernorm(alpha, lnA_g_ref[...], lnA_b_ref[...]))
    mu1 = mu1_ref[...]
    h2 = (dot(v_i, mu1[0:C]) + dot(v_j, mu1[C:2 * C]) + dot(e, mu1[2 * C:])
          + mb1_ref[...])
    msg = dot(_silu(h2), mu2_ref[...]) + mb2_ref[...]
    msg = msg * gate
    msg = dot(msg, wmsg_ref[...]) + bmsg_ref[...]
    msg = _layernorm(msg, lnM_g_ref[...], lnM_b_ref[...])
    # in-kernel segment scatter: local one-hot over this node block, built from
    # the per-slot relative dst (dead slots have dst_rel == -1 -> dropped).
    rows = jax.lax.broadcasted_iota(jnp.int32, (TN, TE), 0)
    oh = (rows == dr_ref[0:1, :]).astype(BF16)
    part = jnp.dot(oh, msg.astype(BF16), preferred_element_type=jnp.float32)
    first = fst_ref[t] == 1

    @pl.when(first)
    def _():
        o_ref[...] = part

    @pl.when(jnp.logical_not(first))
    def _():
        o_ref[...] += part


def _node_update_kernel(h_ref, agg_ref, w_ref, b_ref, g_ref, be_ref, o_ref):
    y = jnp.dot(agg_ref[...].astype(BF16), w_ref[...],
                preferred_element_type=jnp.float32) + b_ref[...]
    y = _layernorm(y, g_ref[...], be_ref[...])
    o_ref[...] = _softplus(h_ref[...] + y)


def comformer_conv(h, lay, ef_slots, p):
    Npad, C = h.shape
    TE, TN = TE_SEG, TN_SEG
    num_tiles = lay["num_tiles"]
    # TODO(synk): gather in-kernel via scalar prefetch instead of XLA take;
    # for now the gathers are written directly as bf16 (halved HBM stream).
    hd = jnp.take(h, lay["dst_slot"], axis=0).astype(BF16)
    hs = jnp.take(h, lay["src_slot"], axis=0).astype(BF16)

    slotC = pl.BlockSpec((TE, C), lambda t, tb, fr: (t, 0))
    dr_spec = pl.BlockSpec((8, TE), lambda t, tb, fr: (t, 0))
    wargs = (_bf(p["wq"]), _row(p["bq"]), _bf(p["wk"]), _row(p["bk"]),
             _bf(p["wv"]), _row(p["bv"]), _bf(p["we"]), _row(p["be"]),
             _bf(p["ku_w1"]), _row(p["ku_b1"]), _bf(p["ku_w2"]), _row(p["ku_b2"]),
             _bf(p["mu_w1"]), _row(p["mu_b1"]), _bf(p["mu_w2"]), _row(p["mu_b2"]),
             _row(p["lnA_g"]), _row(p["lnA_b"]),
             _bf(p["msg_w"]), _row(p["msg_b"]), _row(p["lnM_g"]), _row(p["lnM_b"]))
    agg = pl.pallas_call(
        partial(_conv_seg_kernel, C=C, TN=TN),
        out_shape=jax.ShapeDtypeStruct((Npad, C), F32),
        grid_spec=pltpu.PrefetchScalarGridSpec(
            num_scalar_prefetch=2,
            grid=(num_tiles,),
            in_specs=[slotC, slotC, slotC, dr_spec]
                     + [_full_spec(a) for a in wargs],
            out_specs=pl.BlockSpec((TN, C), lambda t, tb, fr: (tb[t], 0))),
        compiler_params=pltpu.CompilerParams(
            dimension_semantics=("arbitrary",), vmem_limit_bytes=VMEM_LIMIT),
    )(lay["tile_block"], lay["first_flag"],
      hd, hs, ef_slots, lay["dst_rel"], *wargs)

    wc = _bf(p["wc"])
    bc2, bng2, bnb2 = _row(p["bc"]), _row(p["bn_g"]), _row(p["bn_b"])
    return pl.pallas_call(
        _node_update_kernel,
        out_shape=jax.ShapeDtypeStruct((Npad, C), F32),
        grid=(Npad // TN_NODE,),
        in_specs=[
            pl.BlockSpec((TN_NODE, C), lambda i: (i, 0)),
            pl.BlockSpec((TN_NODE, C), lambda i: (i, 0)),
            _full_spec(wc), _full_spec(bc2), _full_spec(bng2), _full_spec(bnb2),
        ],
        out_specs=pl.BlockSpec((TN_NODE, C), lambda i: (i, 0)),
        compiler_params=pltpu.CompilerParams(
            dimension_semantics=("parallel",), vmem_limit_bytes=VMEM_LIMIT),
    )(h, agg, wc, bc2, bng2, bnb2)


# ---------------------------------------- equivariant tensor-product kernels
def _tp1_seg_kernel(tb_ref, fst_ref,
                    ef_ref, xs_ref, sh1_ref, sh2_ref, dr_ref,
                    w1_ref, b1_ref, w2_ref, b2_ref,
                    o_ref, *, TN):
    t = pl.program_id(0)
    TE = ef_ref.shape[0]
    # fused edge-weight MLP layer 1 (relu) -- no [E,D] round trip to HBM
    a1 = jnp.dot(ef_ref[...], w1_ref[...], preferred_element_type=jnp.float32)
    a1 = jnp.maximum(a1 + b1_ref[...], 0.0).astype(BF16)
    xs_bf = xs_ref[...]                                  # [TE, NS] bf16
    xs = xs_bf.astype(jnp.float32)
    # fused edge-weight MLP layer 2 + tensor-product contraction over NS scalars:
    # u[e, :] = sum_k xs[e, k] * (a1[e] @ W2[k] + B2[k])   -- per-k MXU matmuls,
    # so the [E, 5120] weight tensor never exists in HBM.
    u = jnp.dot(xs_bf, b2_ref[...], preferred_element_type=jnp.float32)  # bias term
    for k in range(NS):
        wk = jnp.dot(a1, w2_ref[k], preferred_element_type=jnp.float32)  # [TE, 80]
        u = u + xs[:, k:k + 1] * wk
    inv = 1.0 / math.sqrt(NS)
    t0 = u[:, :NS] * inv
    t1 = u[:, NS:NS + NV] * inv
    t2 = u[:, NS + NV:NS + 2 * NV] * inv
    sh1 = sh1_ref[...]
    sh2 = sh2_ref[...]
    # pack (l=0 | 3 x l=1 | 5 x l=2) into one lane-dense [TE, 128] block.
    # (sh0 == 1 under component normalization, so the l=0 factor is dropped.)
    packed = jnp.concatenate(
        [t0]
        + [t1 * sh1[:, m:m + 1] for m in range(3)]
        + [t2 * sh2[:, m:m + 1] for m in range(5)], axis=-1)
    rows = jax.lax.broadcasted_iota(jnp.int32, (TN, TE), 0)
    oh = (rows == dr_ref[0:1, :]).astype(BF16)
    part = jnp.dot(oh, packed.astype(BF16), preferred_element_type=jnp.float32)
    first = fst_ref[t] == 1

    @pl.when(first)
    def _():
        o_ref[...] = part

    @pl.when(jnp.logical_not(first))
    def _():
        o_ref[...] += part


def _tp2_seg_kernel(tb_ref, fst_ref,
                    ef_ref, nf_ref, sh1_ref, sh2_ref, dr_ref,
                    w1_ref, b1_ref,
                    w2a_ref, b2a_ref, w2b_ref, b2b_ref, w2c_ref, b2c_ref,
                    o_ref, *, TN):
    t = pl.program_id(0)
    TE = ef_ref.shape[0]
    a2 = jnp.dot(ef_ref[...], w1_ref[...], preferred_element_type=jnp.float32)
    a2 = jnp.maximum(a2 + b1_ref[...], 0.0).astype(BF16)
    nf = nf_ref[...].astype(jnp.float32)                 # [TE, NS + 8*NV]
    sh1 = sh1_ref[...]
    sh2 = sh2_ref[...]
    s_in = nf[:, :NS]
    d1 = sum(nf[:, NS + m * NV:NS + (m + 1) * NV] * sh1[:, m:m + 1]
             for m in range(3)) * (1.0 / math.sqrt(3.0))
    d2 = sum(nf[:, NS + 3 * NV + m * NV:NS + 3 * NV + (m + 1) * NV]
             * sh2[:, m:m + 1] for m in range(5)) * (1.0 / math.sqrt(5.0))
    # fused second edge MLP + tensor product back to NS scalars
    p = (jnp.dot(s_in.astype(BF16), b2a_ref[...], preferred_element_type=jnp.float32)
         + jnp.dot(d1.astype(BF16), b2b_ref[...], preferred_element_type=jnp.float32)
         + jnp.dot(d2.astype(BF16), b2c_ref[...], preferred_element_type=jnp.float32))
    for k in range(NS):
        p = p + s_in[:, k:k + 1] * jnp.dot(a2, w2a_ref[k],
                                           preferred_element_type=jnp.float32)
    for v in range(NV):
        p = p + d1[:, v:v + 1] * jnp.dot(a2, w2b_ref[v],
                                         preferred_element_type=jnp.float32)
        p = p + d2[:, v:v + 1] * jnp.dot(a2, w2c_ref[v],
                                         preferred_element_type=jnp.float32)
    o = p * (1.0 / math.sqrt(NS + 2 * NV))
    rows = jax.lax.broadcasted_iota(jnp.int32, (TN, TE), 0)
    oh = (rows == dr_ref[0:1, :]).astype(BF16)
    part = jnp.dot(oh, o.astype(BF16), preferred_element_type=jnp.float32)
    first = fst_ref[t] == 1

    @pl.when(first)
    def _():
        o_ref[...] = part

    @pl.when(jnp.logical_not(first))
    def _():
        o_ref[...] += part


def _equi_out_kernel(h_ref, s_ref, g_ref, be_ref, w_ref, b_ref, o_ref):
    y = _layernorm(s_ref[...], g_ref[...], be_ref[...])
    o_ref[...] = h_ref[...] + jnp.dot(y.astype(BF16), w_ref[...],
                                      preferred_element_type=jnp.float32) + b_ref[...]


def equi_update(h, lay, ef_slots, sh1_slots, sh2_slots, e):
    Npad, C = h.shape
    TE, TN = TE_SEG, TN_SEG
    num_tiles = lay["num_tiles"]
    hs_nodes = linear(h, e["node_w"], e["node_b"])                    # [Npad, NS]
    xs_slots = jnp.take(hs_nodes, lay["src_slot"], axis=0).astype(BF16)

    slotC = pl.BlockSpec((TE, C), lambda t, tb, fr: (t, 0))
    slotNS = pl.BlockSpec((TE, NS), lambda t, tb, fr: (t, 0))
    slotP = pl.BlockSpec((TE, NS + 8 * NV), lambda t, tb, fr: (t, 0))
    slot3 = pl.BlockSpec((TE, 3), lambda t, tb, fr: (t, 0))
    slot5 = pl.BlockSpec((TE, 5), lambda t, tb, fr: (t, 0))
    dr_spec = pl.BlockSpec((8, TE), lambda t, tb, fr: (t, 0))

    w1_1, b1_1 = _bf(e["fc1_w1"]), _row(e["fc1_b1"])
    w2_1, b2_1 = _bf(e["fc1_w2"]), _bf(e["fc1_b2"])
    packed = pl.pallas_call(
        partial(_tp1_seg_kernel, TN=TN),
        out_shape=jax.ShapeDtypeStruct((Npad, NS + 8 * NV), F32),
        grid_spec=pltpu.PrefetchScalarGridSpec(
            num_scalar_prefetch=2, grid=(num_tiles,),
            in_specs=[slotC, slotNS, slot3, slot5, dr_spec,
                      _full_spec(w1_1), _full_spec(b1_1),
                      _full_spec(w2_1), _full_spec(b2_1)],
            out_specs=pl.BlockSpec((TN, NS + 8 * NV),
                                   lambda t, tb, fr: (tb[t], 0))),
        compiler_params=pltpu.CompilerParams(
            dimension_semantics=("arbitrary",), vmem_limit_bytes=VMEM_LIMIT),
    )(lay["tile_block"], lay["first_flag"],
      ef_slots, xs_slots, sh1_slots, sh2_slots, lay["dst_rel"],
      w1_1, b1_1, w2_1, b2_1)
    packed = packed * lay["inv_cnt"]                                  # exact f32 mean

    nf_slots = jnp.take(packed, lay["src_slot"], axis=0).astype(BF16)
    w1_2, b1_2 = _bf(e["fc2_w1"]), _row(e["fc2_b1"])
    w2a, b2a = _bf(e["fc2_w2a"]), _bf(e["fc2_b2a"])
    w2b, b2b = _bf(e["fc2_w2b"]), _bf(e["fc2_b2b"])
    w2c, b2c = _bf(e["fc2_w2c"]), _bf(e["fc2_b2c"])
    s2 = pl.pallas_call(
        partial(_tp2_seg_kernel, TN=TN),
        out_shape=jax.ShapeDtypeStruct((Npad, NS), F32),
        grid_spec=pltpu.PrefetchScalarGridSpec(
            num_scalar_prefetch=2, grid=(num_tiles,),
            in_specs=[slotC, slotP, slot3, slot5, dr_spec,
                      _full_spec(w1_2), _full_spec(b1_2),
                      _full_spec(w2a), _full_spec(b2a),
                      _full_spec(w2b), _full_spec(b2b),
                      _full_spec(w2c), _full_spec(b2c)],
            out_specs=pl.BlockSpec((TN, NS), lambda t, tb, fr: (tb[t], 0))),
        compiler_params=pltpu.CompilerParams(
            dimension_semantics=("arbitrary",), vmem_limit_bytes=VMEM_LIMIT),
    )(lay["tile_block"], lay["first_flag"],
      ef_slots, nf_slots, sh1_slots, sh2_slots, lay["dst_rel"],
      w1_2, b1_2, w2a, b2a, w2b, b2b, w2c, b2c)
    s2 = s2 * lay["inv_cnt"]

    ln_g2, ln_b2, out_b2 = _row(e["ln_g"]), _row(e["ln_b"]), _row(e["out_b"])
    out_w = _bf(e["out_w"])
    return pl.pallas_call(
        _equi_out_kernel,
        out_shape=jax.ShapeDtypeStruct((Npad, C), F32),
        grid=(Npad // TN_NODE,),
        in_specs=[
            pl.BlockSpec((TN_NODE, C), lambda i: (i, 0)),
            pl.BlockSpec((TN_NODE, NS), lambda i: (i, 0)),
            _full_spec(ln_g2), _full_spec(ln_b2),
            _full_spec(out_w), _full_spec(out_b2),
        ],
        out_specs=pl.BlockSpec((TN_NODE, C), lambda i: (i, 0)),
        compiler_params=pltpu.CompilerParams(
            dimension_semantics=("parallel",), vmem_limit_bytes=VMEM_LIMIT),
    )(h, s2, ln_g2, ln_b2, out_w, out_b2)


# ------------------------------- pooling + FC head + log_softmax (readout)
def _readout_kernel(P_ref, invc_ref, h_ref, w1_ref, b1_ref, w2_ref, b2_ref, o_ref):
    g = jnp.dot(P_ref[...], h_ref[...].astype(BF16),
                preferred_element_type=jnp.float32)                  # sum pool
    g = g * invc_ref[...]                                             # exact mean
    g = jnp.dot(g.astype(BF16), w1_ref[...],
                preferred_element_type=jnp.float32) + b1_ref[...]
    g = _silu(g)
    logits = jnp.dot(g.astype(BF16), w2_ref[...],
                     preferred_element_type=jnp.float32) + b2_ref[...]
    m = jnp.max(logits, axis=-1, keepdims=True)
    z = logits - m
    lse = jnp.log(jnp.sum(jnp.exp(z), axis=-1, keepdims=True))
    o_ref[...] = z - lse


# ---------------------------------------------------------------- glue code
def _spherical_harmonics(vec):
    # e3nn-style real SH up to l=2 (l=0 term is identically 1 and is dropped).
    # TODO(synk): exact e3nn component ordering / parity not reproduced.
    n = jnp.linalg.norm(vec, axis=-1, keepdims=True)
    u = jnp.where(n > 1e-12, vec / jnp.maximum(n, 1e-12), jnp.zeros_like(vec))
    x, y, z = u[:, 0], u[:, 1], u[:, 2]
    sh1 = jnp.stack([x, y, z], axis=-1) * math.sqrt(3.0)
    sh2 = jnp.stack([
        math.sqrt(15.0) * x * y,
        math.sqrt(15.0) * y * z,
        (math.sqrt(5.0) / 2.0) * (3.0 * z * z - 1.0),
        math.sqrt(15.0) * x * z,
        (math.sqrt(15.0) / 2.0) * (x * x - y * y),
    ], axis=-1)
    return sh1.astype(F32), sh2.astype(F32)


def ecomformer_forward(params, graph, cfg):
    D = cfg["node_features"]
    x, wyck = graph["x"], graph["wyckoff"]
    N = x.shape[0]
    Npad = _rup(N, NODE_ALIGN)

    # node embedding: Embedding gather (glue) + tiled Linear (Pallas)
    wy = jnp.take(params["wyckoff_emb"], wyck, axis=0)
    xin = jnp.concatenate([x, wy], axis=-1)
    xin = jnp.pad(xin, ((0, Npad - N), (0, 0)))           # padded rows everywhere
    h = linear(xin, *params["atom_embedding"])            # [Npad, D]

    # edge scalar features (real + inversion edges share the RBF distance channel,
    # matching the reference's ef_all = cat([ef, inv_edge_type]))
    edge_attr = graph["edge_attr"]
    ef = -0.75 / jnp.linalg.norm(edge_attr, axis=1, keepdims=True)        # [E1,1]
    inv_ef = graph["inv_edge_type"].reshape(-1, 1).astype(F32)            # [E2,1]
    inv_emb = linear(inv_ef, *params["inv_edge_emb"])                     # [E2,8]
    E1, E2 = ef.shape[0], inv_ef.shape[0]
    E = E1 + E2
    Epad = _rup(E, 128)
    pad_e = Epad - E
    ef_all = jnp.concatenate([ef, inv_ef, jnp.zeros((pad_e, 1), F32)], axis=0)
    F_inv = inv_emb.shape[1]
    inv_pad = jnp.concatenate(
        [jnp.zeros((E1, F_inv), F32), inv_emb, jnp.zeros((pad_e, F_inv), F32)],
        axis=0)
    gamma = (cfg["edge_features"] - 1) / 4.0        # 1/mean diff of linspace(-4,0)
    edge_feat = rbf_edge_features(ef_all, inv_pad, params["rbf_centers"],
                                  params["rbf_w_rbf"], params["rbf_w_inv"],
                                  params["rbf_b"], gamma, D)          # [Epad,D] bf16

    # combined edge index & sorted-by-destination-block segment layout
    edge_index = jnp.concatenate([graph["edge_index"], graph["inv_edge_index"]],
                                 axis=1)
    src = edge_index[0].astype(jnp.int32)
    dst = edge_index[1].astype(jnp.int32)
    lay = build_scatter_layout(src, dst, Npad, TN_SEG, TE_SEG)

    # per-slot edge features / spherical harmonics (shared across all layers)
    ef_slots = jnp.take(edge_feat, lay["edge_slot"], axis=0)          # bf16
    edge_vec = jnp.concatenate([edge_attr, jnp.zeros((E2, 3), F32)], axis=0)
    sh1, sh2 = _spherical_harmonics(edge_vec)
    sh1_slots = jnp.take(sh1, lay["edge_slot"], axis=0)
    sh2_slots = jnp.take(sh2, lay["edge_slot"], axis=0)

    h = comformer_conv(h, lay, ef_slots, params["convs"][0])
    h = equi_update(h, lay, ef_slots, sh1_slots, sh2_slots, params["equi"])
    for c in params["convs"][1:]:
        h = comformer_conv(h, lay, ef_slots, c)

    # scatter-mean pooling + fc + fc_out + log_softmax in one Pallas kernel
    G = graph["num_graphs"]
    batch = graph["batch"].astype(jnp.int32)
    batch_pad = jnp.concatenate([batch, jnp.full((Npad - N,), G, jnp.int32)])
    P = (batch_pad[None, :] == jnp.arange(G, dtype=jnp.int32)[:, None]).astype(BF16)
    cnt = jnp.zeros((G,), F32).at[batch].add(1.0).reshape(G, 1)
    invc = 1.0 / jnp.maximum(cnt, 1.0)
    w1, b1 = params["fc"]
    w2, b2 = params["fc_out"]
    return pl.pallas_call(
        _readout_kernel,
        out_shape=jax.ShapeDtypeStruct((G, cfg["num_topo_classes"]), F32),
        compiler_params=pltpu.CompilerParams(vmem_limit_bytes=VMEM_LIMIT),
    )(P, invc, h, _bf(w1), b1.reshape(1, -1), _bf(w2), b2.reshape(1, -1))


# ----------------------------------------------------------- param init
def _linear_init(key, fan_in, fan_out):
    kw, kb = jax.random.split(key)
    bound = 1.0 / math.sqrt(fan_in)
    w = jax.random.uniform(kw, (fan_in, fan_out), F32, -bound, bound)
    b = jax.random.uniform(kb, (fan_out,), F32, -bound, bound)
    return w, b


def init_params(key, cfg):
    keys = iter(jax.random.split(key, 64))
    D = cfg["node_features"]
    p = {}
    p["wyckoff_emb"] = jax.random.normal(next(keys), (100, cfg["wyckoff_features"]), F32)
    p["inv_edge_emb"] = _linear_init(next(keys), 1, cfg["inversion_edge_features"])
    p["atom_embedding"] = _linear_init(
        next(keys), cfg["atom_input_features"] + cfg["wyckoff_features"], D)
    bins = cfg["edge_features"]
    p["rbf_centers"] = jnp.linspace(-4.0, 0.0, bins).astype(F32).reshape(1, bins)
    w, b = _linear_init(next(keys), bins + cfg["inversion_edge_features"], D)
    p["rbf_w_rbf"], p["rbf_w_inv"], p["rbf_b"] = w[:bins], w[bins:], b
    convs = []
    for _ in range(cfg["conv_layers"]):
        c = {}
        for name in ("q", "k", "v", "e", "c"):
            c["w" + name], c["b" + name] = _linear_init(next(keys), D, D)
        c["ku_w1"], c["ku_b1"] = _linear_init(next(keys), 3 * D, D)
        c["ku_w2"], c["ku_b2"] = _linear_init(next(keys), D, D)
        c["mu_w1"], c["mu_b1"] = _linear_init(next(keys), 3 * D, D)
        c["mu_w2"], c["mu_b2"] = _linear_init(next(keys), D, D)
        c["msg_w"], c["msg_b"] = _linear_init(next(keys), D, D)
        c["lnA_g"], c["lnA_b"] = jnp.ones((D,), F32), jnp.zeros((D,), F32)
        c["lnM_g"], c["lnM_b"] = jnp.ones((D,), F32), jnp.zeros((D,), F32)
        c["bn_g"], c["bn_b"] = jnp.ones((D,), F32), jnp.zeros((D,), F32)
        convs.append(c)
    p["convs"] = convs
    bound = 1.0 / math.sqrt(D)
    e = {}
    e["node_w"], e["node_b"] = _linear_init(next(keys), D, NS)
    e["fc1_w1"], e["fc1_b1"] = _linear_init(next(keys), D, D)
    # per-scalar-channel tensor-product weight generator, kept resident in-kernel
    e["fc1_w2"] = jax.random.uniform(next(keys), (NS, D, NS + 2 * NV), F32, -bound, bound)
    e["fc1_b2"] = jax.random.uniform(next(keys), (NS, NS + 2 * NV), F32, -bound, bound)
    e["fc2_w1"], e["fc2_b1"] = _linear_init(next(keys), D, D)
    e["fc2_w2a"] = jax.random.uniform(next(keys), (NS, D, NS), F32, -bound, bound)
    e["fc2_b2a"] = jax.random.uniform(next(keys), (NS, NS), F32, -bound, bound)
    e["fc2_w2b"] = jax.random.uniform(next(keys), (NV, D, NS), F32, -bound, bound)
    e["fc2_b2b"] = jax.random.uniform(next(keys), (NV, NS), F32, -bound, bound)
    e["fc2_w2c"] = jax.random.uniform(next(keys), (NV, D, NS), F32, -bound, bound)
    e["fc2_b2c"] = jax.random.uniform(next(keys), (NV, NS), F32, -bound, bound)
    e["ln_g"], e["ln_b"] = jnp.ones((NS,), F32), jnp.zeros((NS,), F32)
    e["out_w"], e["out_b"] = _linear_init(next(keys), NS, D)
    p["equi"] = e
    p["fc"] = _linear_init(next(keys), D, cfg["fc_features"])
    p["fc_out"] = _linear_init(next(keys), cfg["fc_features"], cfg["num_topo_classes"])
    return p


# ------------------------------------------------------------------- main
if __name__ == "__main__":
    cfg = dict(conv_layers=3, atom_input_features=92, wyckoff_features=16,
               inversion_edge_features=8, edge_features=256, node_features=256,
               fc_features=256, num_topo_classes=4)
    root = jax.random.PRNGKey(0)
    kp, kx, kw, ke, kei, kie, kit = jax.random.split(root, 7)
    N, E1, E2, G = 8, 16, 8, 2
    graph = dict(
        x=jax.random.normal(kx, (N, cfg["atom_input_features"]), F32),
        wyckoff=jax.random.randint(kw, (N,), 0, 100),
        edge_attr=jax.random.normal(ke, (E1, 3), F32),
        edge_index=jax.random.randint(kei, (2, E1), 0, N),
        inv_edge_index=jax.random.randint(kie, (2, E2), 0, N),
        inv_edge_type=jax.random.randint(kit, (E2,), 0, 2),
        batch=jnp.array([0, 0, 0, 0, 1, 1, 1, 1], jnp.int32),
        num_graphs=G,
    )
    params = init_params(kp, cfg)
    out = ecomformer_forward(params, graph, cfg)
    out = jax.block_until_ready(out)
    assert out.shape == (G, cfg["num_topo_classes"])
    assert bool(jnp.all(jnp.isfinite(out)))
    print("KERNEL_OK")
</pallas_src>

<mosaic_0001>
module attributes {stable_mosaic.version = 11 : i64} {
  func.func @_linear_kernel(%arg0: i32, %arg1: i32, %arg2: memref<128x108xf32, #tpu.memory_space<vmem>>, %arg3: memref<108x256xf32, #tpu.memory_space<vmem>>, %arg4: memref<1x256xf32, #tpu.memory_space<vmem>>, %arg5: memref<128x256xf32, #tpu.memory_space<vmem>>) attributes {dimension_semantics = [#tpu.dimension_semantics<parallel>, #tpu.dimension_semantics<parallel>], iteration_bounds = array<i64: 1, 1>, scalar_prefetch = 0 : i64, scratch_operands = 0 : i64, tpu.core_type = #tpu.core_type<tc>, window_params = [{transform_indices = @transform_0, window_bounds = array<i64: 128, 108>}, {transform_indices = @transform_1, window_bounds = array<i64: 108, 256>}, {transform_indices = @transform_2, window_bounds = array<i64: 1, 256>}, {transform_indices = @transform_3, window_bounds = array<i64: 128, 256>}]} {
    %c0 = arith.constant 0 : index
    %c0_0 = arith.constant 0 : index
    %0 = vector.load %arg2[%c0, %c0_0] : memref<128x108xf32, #tpu.memory_space<vmem>>, vector<128x108xf32>
    %1 = arith.truncf %0 : vector<128x108xf32> to vector<128x108xbf16>
    %c0_1 = arith.constant 0 : index
    %c0_2 = arith.constant 0 : index
    %2 = vector.load %arg3[%c0_1, %c0_2] : memref<108x256xf32, #tpu.memory_space<vmem>>, vector<108x256xf32>
    %3 = arith.truncf %2 : vector<108x256xf32> to vector<108x256xbf16>
    %cst = arith.constant dense<0.000000e+00> : vector<128x256xf32>
    %4 = tpu.matmul %1, %3, %cst {dimension_numbers = #tpu.dot_dimension_numbers<[1], [0], [0], [1], [0, 0, 1, 1], [], []>} : vector<128x108xbf16>, vector<108x256xbf16>, vector<128x256xf32> -> vector<128x256xf32>
    %c0_3 = arith.constant 0 : index
    %c0_4 = arith.constant 0 : index
    %5 = vector.load %arg4[%c0_3, %c0_4] : memref<1x256xf32, #tpu.memory_space<vmem>>, vector<1x256xf32>
    %6 = vector.broadcast %5 : vector<1x256xf32> to vector<128x256xf32>
    %7 = arith.addf %4, %6 : vector<128x256xf32>
    %c0_5 = arith.constant 0 : index
    %c0_6 = arith.constant 0 : index
    %8 = vector.load %arg5[%c0_5, %c0_6] : memref<128x256xf32, #tpu.memory_space<vmem>>, vector<128x256xf32>
    tpu.vector_store %arg5[%c0_5, %c0_6], %7 {strides = array<i32>} : memref<128x256xf32, #tpu.memory_space<vmem>>, vector<128x256xf32>,
    return
  }
  func.func @transform_0(%arg0: i32, %arg1: i32) -> (i32, i32) {
    %c0_i32 = arith.constant 0 : i32
    %c0_i32_0 = arith.constant 0 : i32
    return %arg0, %c0_i32 : i32, i32
  }
  func.func @transform_1(%arg0: i32, %arg1: i32) -> (i32, i32) {
    %c0_i32 = arith.constant 0 : i32
    %c0_i32_0 = arith.constant 0 : i32
    return %c0_i32, %arg1 : i32, i32
  }
  func.func @transform_2(%arg0: i32, %arg1: i32) -> (i32, i32) {
    %c0_i32 = arith.constant 0 : i32
    %c0_i32_0 = arith.constant 0 : i32
    return %c0_i32, %arg1 : i32, i32
  }
  func.func @transform_3(%arg0: i32, %arg1: i32) -> (i32, i32) {
    %c0_i32 = arith.constant 0 : i32
    return %arg0, %arg1 : i32, i32
  }
}

</mosaic_0001>

<llo_original>
// kernel: tpu_custom_call.1
$region0: #{tpu_custom_call.1}
  #allocation0 [shape = 'u32[]', space=smem, size = 0x4, offset = 0x4, fixed_abs, tag = 'smem constant byte address 0x4 - core index']
  #allocation1 [shape = 'u32[144,128]{1,0:T(1,128)}', space=vmem, size = 0x12000, scoped, tag = 'internal scratch']
  %s0 = inlined_call_operand.vmem [shape: f32[128,108], index: 0, kind: input, shape index: {}]
  %s1 = inlined_call_operand.vmem [shape: f32[108,256], index: 1, kind: input, shape index: {}]
  %s2 = inlined_call_operand.vmem [shape: f32[1,256], index: 2, kind: input, shape index: {}]
  %s3 = inlined_call_operand.hbm [shape: f32[128,256], index: 3, kind: output, shape index: {}]
  %s4 = sld [smem:[#allocation0]]
  $region22: #{tpu_custom_call.1} parent=0
    _
  %s6 = ssub.s32 1, %s4
  %s7 = scalar_select 0, %s6, %s4
  $region1: #{tpu_custom_call.1} parent=0
    #allocation2 [shape = 'u8[131072]{0}', space=vmem, size = 0x20000, scoped, tag = 'output window, operand 0, single buffered']
    #allocation3 [shape = 's32[1]{0}', space=sflag, size = 0x4, scoped, tag = 'scoped memory for tpu_custom_call.1']
    %8 = vsyncpa [#allocation3], 0
    // Predicated region
    $region2: #{tpu_custom_call.1} parent=1 // pred_check
      _
    $region3: #{tpu_custom_call.1} parent=1 // pred_check_branch
      %10 = sbr.rel (0) target = $region5
    $region4: #{tpu_custom_call.1} parent=1 // pred_region
      _
    $region5: #{tpu_custom_call.1} parent=1 // pred_fallthru
      _
    // Predicated region
    $region6: #{tpu_custom_call.1} parent=1 // pred_check
      _
    $region7: #{tpu_custom_call.1} parent=1 // pred_check_branch
      %12 = sbr.rel (0) target = $region9
    $region8: #{tpu_custom_call.1} parent=1 // pred_region
      _
    $region9: #{tpu_custom_call.1} parent=1 // pred_fallthru
      _
    // Predicated region
    $region10: #{tpu_custom_call.1} parent=1 // pred_check
      _
    $region11: #{tpu_custom_call.1} parent=1 // pred_check_branch
      %14 = sbr.rel (0) target = $region13
    $region12: #{tpu_custom_call.1} parent=1 // pred_region
      _
    $region13: #{tpu_custom_call.1} parent=1 // pred_fallthru
      _
    %v16 = vld [vmem:[%s0] sm:$0xff]
    %v17 = vld [vmem:[%s0 + $0x8] sm:$0xff]
    %v18 = vld [vmem:[%s0 + $0x10] sm:$0xff]
    %v19 = vld [vmem:[%s0 + $0x18] sm:$0xff]
    %v20 = vld [vmem:[%s0 + $0x20] sm:$0xff]
    %v21 = vld [vmem:[%s0 + $0x28] sm:$0xff]
    %v22 = vld [vmem:[%s0 + $0x30] sm:$0xff]
    %v23 = vld [vmem:[%s0 + $0x38] sm:$0xff]
    %v24 = vld [vmem:[%s0 + $0x40] sm:$0xff]
    %v25 = vld [vmem:[%s0 + $0x48] sm:$0xff]
    %v26 = vld [vmem:[%s0 + $0x50] sm:$0xff]
    %v27 = vld [vmem:[%s0 + $0x58] sm:$0xff]
    %v28 = vld [vmem:[%s0 + $0x60] sm:$0xff]
    %v29 = vld [vmem:[%s0 + $0x68] sm:$0xff]
    %v30 = vld [vmem:[%s0 + $0x70] sm:$0xff]
    %v31 = vld [vmem:[%s0 + $0x78] sm:$0xff]
    %v32 = vpack.c.bf16 %v17, %v16
    %v33 = vpack.c.bf16 %v19, %v18
    %v34 = vpack.c.bf16 %v21, %v20
    %v35 = vpack.c.bf16 %v23, %v22
    %v36 = vpack.c.bf16 %v25, %v24
    %v37 = vpack.c.bf16 %v27, %v26
    %v38 = vpack.c.bf16 %v29, %v28
    %v39 = vpack.c.bf16 %v31, %v30
    %v40 = vld [vmem:[%s1] sm:$0xff]
    %v41 = vld [vmem:[%s1 + $0x8] sm:$0xff]
    %v42 = vld [vmem:[%s1 + $0x10] sm:$0xff]
    %v43 = vld [vmem:[%s1 + $0x18] sm:$0xff]
    %v44 = vld [vmem:[%s1 + $0x20] sm:$0xff]
    %v45 = vld [vmem:[%s1 + $0x28] sm:$0xff]
    %v46 = vld [vmem:[%s1 + $0x30] sm:$0xff]
    %v47 = vld [vmem:[%s1 + $0x38] sm:$0xff]
    %v48 = vld [vmem:[%s1 + $0x40] sm:$0xff]
    %v49 = vld [vmem:[%s1 + $0x48] sm:$0xff]
    %v50 = vld [vmem:[%s1 + $0x50] sm:$0xff]
    %v51 = vld [vmem:[%s1 + $0x58] sm:$0xff]
    %v52 = vld [vmem:[%s1 + $0x60] sm:$0xff]
    %v53 = vld [vmem:[%s1 + $0x68] sm:$0xff]
    %v54 = vld [vmem:[%s1 + $0x70] sm:$0xff]
    %v55 = vld [vmem:[%s1 + $0x78] sm:$0xff]
    %v56 = vld [vmem:[%s1 + $0x80] sm:$0xff]
    %v57 = vld [vmem:[%s1 + $0x88] sm:$0xff]
    %v58 = vld [vmem:[%s1 + $0x90] sm:$0xff]
    %v59 = vld [vmem:[%s1 + $0x98] sm:$0xff]
    %v60 = vld [vmem:[%s1 + $0xa0] sm:$0xff]
    %v61 = vld [vmem:[%s1 + $0xa8] sm:$0xff]
    %v62 = vld [vmem:[%s1 + $0xb0] sm:$0xff]
    %v63 = vld [vmem:[%s1 + $0xb8] sm:$0xff]
    %v64 = vld [vmem:[%s1 + $0xc0] sm:$0xff]
    %v65 = vld [vmem:[%s1 + $0xc8] sm:$0xff]
    %v66 = vld [vmem:[%s1 + $0xd0] sm:$0xf]
    %v67 = vld [vmem:[%s1 + $0xd8] sm:$0xf]
    %v68 = vpack.c.bf16 %v42, %v40
    %v69 = vpack.c.bf16 %v43, %v41
    %v70 = vpack.c.bf16 %v46, %v44
    %v71 = vpack.c.bf16 %v47, %v45
    %v72 = vpack.c.bf16 %v50, %v48
    %v73 = vpack.c.bf16 %v51, %v49
    %v74 = vpack.c.bf16 %v54, %v52
    %v75 = vpack.c.bf16 %v55, %v53
    %v76 = vpack.c.bf16 %v58, %v56
    %v77 = vpack.c.bf16 %v59, %v57
    %v78 = vpack.c.bf16 %v62, %v60
    %v79 = vpack.c.bf16 %v63, %v61
    %v80 = vpack.c.bf16 %v66, %v64
    %v81 = vpack.c.bf16 %v67, %v65
    %v82 = vld [vmem:[%s2] sm:$0x3]
    %v84 = vlaneseq
    %v85 = vshrl.u32 %v84, 7
    %v86 = vsub.s32 0, %v85
    %v87 = vrot.slane %v82, %v86
    %v88 = vlaneseq
    %v89 = vshrl.u32 %v88, 7
    %v90 = vsub.s32 1, %v89
    %v91 = vrot.slane %v82, %v90
    %vm94 = vcmask 883712
    %v96 = vsel %vm94, %v32, 0
    %v99 = vsel %vm94, %v33, 0
    %v102 = vsel %vm94, %v34, 0
    %v105 = vsel %vm94, %v35, 0
    %v108 = vsel %vm94, %v36, 0
    %v111 = vsel %vm94, %v37, 0
    %v114 = vsel %vm94, %v38, 0
    %v117 = vsel %vm94, %v39, 0
    %vm119 = vcmask 1045504
    %v121 = vsel %vm119, %v80, 0
    %v124 = vsel %vm119, %v81, 0
    %126 = vmatprep.subr.bf16.mxu0 %v69
    %127 = vmatpush1.bf16.msra.mxu0 %v68
    %128 = vmatprep.subr.bf16.mxu0 %v71
    %129 = vmatpush1.bf16.msra.mxu0 %v70
    %130 = vmatprep.subr.bf16.mxu0 %v73
    %131 = vmatpush1.bf16.msra.mxu0 %v72
    %132 = vmatprep.subr.bf16.mxu0 %v75
    %133 = vmatpush1.bf16.msra.mxu0 %v74
    %134 = vmatprep.subr.bf16.mxu0 %v77
    %135 = vmatpush1.bf16.msra.mxu0 %v76
    %136 = vmatprep.subr.bf16.mxu0 %v79
    %137 = vmatpush1.bf16.msra.mxu0 %v78
    %138 = vmatprep.subr.bf16.mxu0 %v124
    %139 = vmatpush1.bf16.msra.mxu0 %v121
    %140 = vmatprep.subr.bf16.mxu0 0
    %141 = vmatpush1.bf16.msra.mxu0 0
    %142 = vmatprep.subr.bf16.mxu0 0
    %143 = vmatpush1.bf16.msra.mxu0 0
    %144 = vmatprep.subr.bf16.mxu0 0
    %145 = vmatpush1.bf16.msra.mxu0 0
    %146 = vmatprep.subr.bf16.mxu0 0
    %147 = vmatpush1.bf16.msra.mxu0 0
    %148 = vmatprep.subr.bf16.mxu0 0
    %149 = vmatpush1.bf16.msra.mxu0 0
    %150 = vmatprep.subr.bf16.mxu0 0
    %151 = vmatpush1.bf16.msra.mxu0 0
    %152 = vmatprep.subr.bf16.mxu0 0
    %153 = vmatpush1.bf16.msra.mxu0 0
    %154 = vmatprep.subr.bf16.mxu0 0
    %155 = vmatpush1.bf16.msra.mxu0 0
    %156 = vmatprep.subr.bf16.mxu0 0
    %157 = vmatpush1.bf16.msra.mxu0 0
    %158 = vmatprep.mubr.bf16.mxu0 0
    %159 = vmatmul.mubr.bf16.gmra.mrb[0].mxu0 %v96
    %v160 = vpop.f32.mrb[0].mxu0
    %v161 = vadd.f32 %v87, %v160
    %v162 = vpop.f32.mrb[0].mxu0
    %v163 = vadd.f32 %v91, %v162
    %v164 = vpop.f32.mrb[0].mxu0
    %v165 = vadd.f32 %v87, %v164
    %v166 = vpop.f32.mrb[0].mxu0
    %v167 = vadd.f32 %v91, %v166
    %168 = vmatprep.mubr.bf16.mxu0 0
    %169 = vmatmul.mubr.bf16.gmra.mrb[0].mxu0 %v99
    %v170 = vpop.f32.mrb[0].mxu0
    %v171 = vadd.f32 %v87, %v170
    %v172 = vpop.f32.mrb[0].mxu0
    %v173 = vadd.f32 %v91, %v172
    %v174 = vpop.f32.mrb[0].mxu0
    %v175 = vadd.f32 %v87, %v174
    %v176 = vpop.f32.mrb[0].mxu0
    %v177 = vadd.f32 %v91, %v176
    %178 = vmatprep.mubr.bf16.mxu0 0
    %179 = vmatmul.mubr.bf16.gmra.mrb[0].mxu0 %v102
    %v180 = vpop.f32.mrb[0].mxu0
    %v181 = vadd.f32 %v87, %v180
    %v182 = vpop.f32.mrb[0].mxu0
    %v183 = vadd.f32 %v91, %v182
    %v184 = vpop.f32.mrb[0].mxu0
    %v185 = vadd.f32 %v87, %v184
    %v186 = vpop.f32.mrb[0].mxu0
    %v187 = vadd.f32 %v91, %v186
    %188 = vmatprep.mubr.bf16.mxu0 0
    %189 = vmatmul.mubr.bf16.gmra.mrb[0].mxu0 %v105
    %v190 = vpop.f32.mrb[0].mxu0
    %v191 = vadd.f32 %v87, %v190
    %v192 = vpop.f32.mrb[0].mxu0
    %v193 = vadd.f32 %v91, %v192
    %v194 = vpop.f32.mrb[0].mxu0
    %v195 = vadd.f32 %v87, %v194
    %v196 = vpop.f32.mrb[0].mxu0
    %v197 = vadd.f32 %v91, %v196
    %198 = vmatprep.mubr.bf16.mxu0 0
    %199 = vmatmul.mubr.bf16.gmra.mrb[0].mxu0 %v108
    %v200 = vpop.f32.mrb[0].mxu0
    %v201 = vadd.f32 %v87, %v200
    %v202 = vpop.f32.mrb[0].mxu0
    %v203 = vadd.f32 %v91, %v202
    %v204 = vpop.f32.mrb[0].mxu0
    %v205 = vadd.f32 %v87, %v204
    %v206 = vpop.f32.mrb[0].mxu0
    %v207 = vadd.f32 %v91, %v206
    %208 = vmatprep.mubr.bf16.mxu0 0
    %209 = vmatmul.mubr.bf16.gmra.mrb[0].mxu0 %v111
    %v210 = vpop.f32.mrb[0].mxu0
    %v211 = vadd.f32 %v87, %v210
    %v212 = vpop.f32.mrb[0].mxu0
    %v213 = vadd.f32 %v91, %v212
    %v214 = vpop.f32.mrb[0].mxu0
    %v215 = vadd.f32 %v87, %v214
    %v216 = vpop.f32.mrb[0].mxu0
    %v217 = vadd.f32 %v91, %v216
    %218 = vmatprep.mubr.bf16.mxu0 0
    %219 = vmatmul.mubr.bf16.gmra.mrb[0].mxu0 %v114
    %v220 = vpop.f32.mrb[0].mxu0
    %v221 = vadd.f32 %v87, %v220
    %v222 = vpop.f32.mrb[0].mxu0
    %v223 = vadd.f32 %v91, %v222
    %v224 = vpop.f32.mrb[0].mxu0
    %v225 = vadd.f32 %v87, %v224
    %v226 = vpop.f32.mrb[0].mxu0
    %v227 = vadd.f32 %v91, %v226
    %228 = vmatprep.mubr.bf16.mxu0 0
    %229 = vmatmul.mubr.bf16.gmra.mrb[0].mxu0 %v117
    %v230 = vpop.f32.mrb[0].mxu0
    %v231 = vadd.f32 %v87, %v230
    %v232 = vpop.f32.mrb[0].mxu0
    %v233 = vadd.f32 %v91, %v232
    %v234 = vpop.f32.mrb[0].mxu0
    %v235 = vadd.f32 %v87, %v234
    %v236 = vpop.f32.mrb[0].mxu0
    %v237 = vadd.f32 %v91, %v236
    %238 = vdwg.mxu0
    %239 = vst [vmem:[#allocation2] sm:$0xff] %v161
    %240 = vst [vmem:[#allocation2 + $0x8] sm:$0xff] %v163
    %241 = vst [vmem:[#allocation2 + $0x10] sm:$0xff] %v165
    %242 = vst [vmem:[#allocation2 + $0x18] sm:$0xff] %v167
    %243 = vst [vmem:[#allocation2 + $0x20] sm:$0xff] %v171
    %244 = vst [vmem:[#allocation2 + $0x28] sm:$0xff] %v173
    %245 = vst [vmem:[#allocation2 + $0x30] sm:$0xff] %v175
    %246 = vst [vmem:[#allocation2 + $0x38] sm:$0xff] %v177
    %247 = vst [vmem:[#allocation2 + $0x40] sm:$0xff] %v181
    %248 = vst [vmem:[#allocation2 + $0x48] sm:$0xff] %v183
    %249 = vst [vmem:[#allocation2 + $0x50] sm:$0xff] %v185
    %250 = vst [vmem:[#allocation2 + $0x58] sm:$0xff] %v187
    %251 = vst [vmem:[#allocation2 + $0x60] sm:$0xff] %v191
    %252 = vst [vmem:[#allocation2 + $0x68] sm:$0xff] %v193
    %253 = vst [vmem:[#allocation2 + $0x70] sm:$0xff] %v195
    %254 = vst [vmem:[#allocation2 + $0x78] sm:$0xff] %v197
    %255 = vst [vmem:[#allocation2 + $0x80] sm:$0xff] %v201
    %256 = vst [vmem:[#allocation2 + $0x88] sm:$0xff] %v203
    %257 = vst [vmem:[#allocation2 + $0x90] sm:$0xff] %v205
    %258 = vst [vmem:[#allocation2 + $0x98] sm:$0xff] %v207
    %259 = vst [vmem:[#allocation2 + $0xa0] sm:$0xff] %v211
    %260 = vst [vmem:[#allocation2 + $0xa8] sm:$0xff] %v213
    %261 = vst [vmem:[#allocation2 + $0xb0] sm:$0xff] %v215
    %262 = vst [vmem:[#allocation2 + $0xb8] sm:$0xff] %v217
    %263 = vst [vmem:[#allocation2 + $0xc0] sm:$0xff] %v221
    %264 = vst [vmem:[#allocation2 + $0xc8] sm:$0xff] %v223
    %265 = vst [vmem:[#allocation2 + $0xd0] sm:$0xff] %v225
    %266 = vst [vmem:[#allocation2 + $0xd8] sm:$0xff] %v227
    %267 = vst [vmem:[#allocation2 + $0xe0] sm:$0xff] %v231
    %268 = vst [vmem:[#allocation2 + $0xe8] sm:$0xff] %v233
    %269 = vst [vmem:[#allocation2 + $0xf0] sm:$0xff] %v235
    %270 = vst [vmem:[#allocation2 + $0xf8] sm:$0xff] %v237
    // Predicated region
    $region14: #{tpu_custom_call.1} parent=1 // pred_check
      _
    $region15: #{tpu_custom_call.1} parent=1 // pred_check_branch
      %272 = sbr.rel (0) target = $region17
    $region16: #{tpu_custom_call.1} parent=1 // pred_region
      %s274 = ssub.s32 4096, 4096
      %275 = vsyncadd [#allocation3], %s274
      %s276 = sshll.u32 [#allocation2], 4
      %s277 = int_to_ptr.vmem [resolvable:$true] %s276
      %282 = dma.vmem_to_hbm [thread:$0]  %s277, 4096, %s3, [#allocation3], 256, 256, 16
    $region17: #{tpu_custom_call.1} parent=1 // pred_fallthru
      _
    // Predicated region
    $region18: #{tpu_custom_call.1} parent=1 // pred_check
      _
    $region19: #{tpu_custom_call.1} parent=1 // pred_check_branch
      %284 = sbr.rel (0) target = $region21
    $region20: #{tpu_custom_call.1} parent=1 // pred_region
      %285 = dma.done [#allocation3], 4096
    $region21: #{tpu_custom_call.1} parent=1 // pred_fallthru
      _
    %286 = vsyncpa [#allocation3], 1

</llo_original>
